<compile_context>
chip_gen: v7x
topology: tpu7x:2x2x1
jax: 0.10.0
libtpu: 0.0.40
codegen_flags: <defaults>
</compile_context>

<pallas_src>
import jax
import jax.numpy as jnp
import numpy as np
from jax import lax
from jax.experimental import pallas as pl
from jax.experimental.pallas import tpu as pltpu


# ---------------------------------------------------------------------------
# helpers
# ---------------------------------------------------------------------------
def _lane_fold_factor(rows: int, f: int) -> int:
    """k such that (R, F) -> (R//k, k*F) is a free reshape and k*F == 128."""
    if f < 128 and 128 % f == 0 and rows % (128 // f) == 0:
        return 128 // f
    return 1


def _pick_tile_rows(rows: int, width: int, itemsize: int) -> int:
    """Row-tile: big enough to amortize per-step overhead (~2 MiB blocks),
    small enough that double-buffered in+out tiles fit comfortably inside the
    v7x (64 MiB physical / 32 MiB scoped) VMEM budget."""
    target_bytes = 2 << 20
    tr = (target_bytes // max(width * itemsize, 1)) // 8 * 8
    tr = max(8, min(1024, tr))
    if rows <= tr:
        return rows                      # single full block: always legal
    return tr


def _legalize_tile(tr: int, rows: int) -> int:
    tr = min(tr, rows)
    if tr < rows:                        # non-full block must be a multiple of 8
        tr = max(8, (tr // 8) * 8)
    return tr


# ---------------------------------------------------------------------------
# track(): streaming running-statistics reduction
#   S1 = sum(x - mean_old), S2 = sum((x - mean_old)^2)      (per lane group)
#   mean_new = mean + S1/c_new ; M2_new = M2 + S2 - S1^2/c_new
# (algebraically identical to delta * (x - mean_new), shifted by mean_old to
#  avoid catastrophic cancellation)
# ---------------------------------------------------------------------------
def _make_track_kernel(tile_rows: int, total_rows: int):
    need_mask = (total_rows % tile_rows) != 0

    def kernel(x_ref, mean_ref, s1_ref, s2_ref):
        i = pl.program_id(0)

        @pl.when(i == 0)
        def _():
            s1_ref[...] = jnp.zeros_like(s1_ref)
            s2_ref[...] = jnp.zeros_like(s2_ref)

        d = x_ref[...].astype(jnp.float32) - mean_ref[...]
        if need_mask:
            row_ids = i * tile_rows + lax.broadcasted_iota(jnp.int32, d.shape, 0)
            d = jnp.where(row_ids < total_rows, d, 0.0)
        s1_ref[...] += jnp.sum(d, axis=0, keepdims=True)
        s2_ref[...] += jnp.sum(d * d, axis=0, keepdims=True)

    return kernel


def running_norm_track(x, count, mean, m2, *, tile_rows=None):
    f = mean.shape[0]
    x2 = x.reshape(-1, f)
    rows = x2.shape[0]

    k = _lane_fold_factor(rows, f)
    width = k * f
    rows_folded = rows // k
    xf = x2.reshape(rows_folded, width)                      # free reshape
    mean_t = jnp.tile(mean.astype(jnp.float32), k).reshape(1, width)

    itemsize = jnp.dtype(x.dtype).itemsize
    tr = tile_rows if tile_rows is not None else _pick_tile_rows(
        rows_folded, width, itemsize)
    tr = _legalize_tile(tr, rows_folded)
    num_tiles = pl.cdiv(rows_folded, tr)

    cost = pl.CostEstimate(
        flops=4 * rows_folded * width,
        transcendentals=0,
        bytes_accessed=rows_folded * width * itemsize + 3 * width * 4,
    )

    s1, s2 = pl.pallas_call(
        _make_track_kernel(tr, rows_folded),
        out_shape=(
            jax.ShapeDtypeStruct((1, width), jnp.float32),
            jax.ShapeDtypeStruct((1, width), jnp.float32),
        ),
        grid_spec=pltpu.PrefetchScalarGridSpec(
            num_scalar_prefetch=0,
            grid=(num_tiles,),
            in_specs=[
                pl.BlockSpec((tr, width), lambda i: (i, 0)),   # x (streamed)
                pl.BlockSpec((1, width), lambda i: (0, 0)),    # mean_old
            ],
            out_specs=(
                pl.BlockSpec((1, width), lambda i: (0, 0)),    # S1 (resident)
                pl.BlockSpec((1, width), lambda i: (0, 0)),    # S2 (resident)
            ),
        ),
        compiler_params=pltpu.CompilerParams(
            dimension_semantics=("arbitrary",)),               # reduction axis
        cost_estimate=cost,
    )(xf, mean_t)

    # Tiny F-sized epilogue in plain JAX: fold the k lane groups + finalize.
    s1 = s1.reshape(k, f).sum(axis=0)
    s2 = s2.reshape(k, f).sum(axis=0)
    new_count = (count + rows).astype(jnp.int32)
    c_new = new_count.astype(jnp.float32)
    new_mean = mean.astype(jnp.float32) + s1 / c_new
    new_m2 = m2.astype(jnp.float32) + s2 - (s1 * s1) / c_new
    return new_count, new_mean, new_m2


# ---------------------------------------------------------------------------
# forward(): elementwise normalization
#   if count < 2: out = x
#   else:         out = (x - mean) * rsqrt(M2/count + eps)
# ---------------------------------------------------------------------------
def _make_norm_kernel(eps: float):
    def kernel(count_ref, x_ref, mean_ref, m2_ref, out_ref):
        count = count_ref[0]

        @pl.when(count < 2)
        def _():
            out_ref[...] = x_ref[...]

        @pl.when(count >= 2)
        def _():
            x = x_ref[...].astype(jnp.float32)
            c_f = count.astype(jnp.float32)
            # rsqrt on the (1, W) stats row runs on the EUP; per-element path
            # is a single VPU multiply (no per-element divide).
            inv_std = lax.rsqrt(m2_ref[...] / c_f + eps)
            out_ref[...] = ((x - mean_ref[...]) * inv_std).astype(out_ref.dtype)

    return kernel


def running_norm_forward(x, count, mean, m2, eps=1e-5, training=False,
                         *, tile_rows=None):
    """Mirrors RunningNorm.forward. Returns (output, (count, mean, M2))."""
    if training:
        count, mean, m2 = running_norm_track(x, count, mean, m2,
                                             tile_rows=tile_rows)

    f = mean.shape[0]
    orig_shape = x.shape
    x2 = x.reshape(-1, f)
    rows = x2.shape[0]

    k = _lane_fold_factor(rows, f)
    width = k * f
    rows_folded = rows // k
    xf = x2.reshape(rows_folded, width)                      # free reshape
    mean_t = jnp.tile(mean.astype(jnp.float32), k).reshape(1, width)
    m2_t = jnp.tile(m2.astype(jnp.float32), k).reshape(1, width)

    itemsize = jnp.dtype(x.dtype).itemsize
    tr = tile_rows if tile_rows is not None else _pick_tile_rows(
        rows_folded, width, itemsize)
    tr = _legalize_tile(tr, rows_folded)
    num_tiles = pl.cdiv(rows_folded, tr)

    cost = pl.CostEstimate(
        flops=2 * rows_folded * width,
        transcendentals=width * num_tiles,
        bytes_accessed=2 * rows_folded * width * itemsize + 2 * width * 4,
    )

    out = pl.pallas_call(
        _make_norm_kernel(float(eps)),
        out_shape=jax.ShapeDtypeStruct((rows_folded, width), x.dtype),
        grid_spec=pltpu.PrefetchScalarGridSpec(
            num_scalar_prefetch=1,                           # count -> SMEM
            grid=(num_tiles,),
            in_specs=[
                pl.BlockSpec((tr, width), lambda i, c: (i, 0)),  # x
                pl.BlockSpec((1, width), lambda i, c: (0, 0)),   # mean
                pl.BlockSpec((1, width), lambda i, c: (0, 0)),   # M2
            ],
            out_specs=pl.BlockSpec((tr, width), lambda i, c: (i, 0)),
        ),
        compiler_params=pltpu.CompilerParams(
            dimension_semantics=("parallel",)),              # independent rows
        cost_estimate=cost,
    )(jnp.asarray(count, jnp.int32).reshape(1), xf, mean_t, m2_t)

    return out.reshape(orig_shape), (count, mean, m2)


# ---------------------------------------------------------------------------
# Pure-JAX reference (mirrors the PyTorch module) for correctness checks.
# ---------------------------------------------------------------------------
def _ref_forward(x, count, mean, m2, eps=1e-5, training=False):
    if training:
        x2 = x.reshape(-1, x.shape[-1]).astype(jnp.float32)
        count = count + x2.shape[0]
        delta = x2 - mean
        mean = mean + delta.sum(0) / count
        m2 = m2 + (delta * (x2 - mean)).sum(0)
    if int(count) < 2:
        return x, (count, mean, m2)
    var = m2 / count + eps
    out = ((x.astype(jnp.float32) - mean) / jnp.sqrt(var)).astype(x.dtype)
    return out, (count, mean, m2)


if __name__ == "__main__":
    num_features = 32
    key = jax.random.PRNGKey(0)
    k1, k2, k3 = jax.random.split(key, 3)

    # Buffers as in __init__: count=0, mean=0, M2=0, eps=1e-5.
    count = jnp.asarray(0, jnp.int32)
    mean = jnp.zeros((num_features,), jnp.float32)
    m2 = jnp.zeros((num_features,), jnp.float32)

    # --- 1) small example: eval with count=0 -> must return x unchanged. ---
    x = jax.random.normal(k1, (2, 8, num_features), dtype=jnp.float32)
    out0, _ = running_norm_forward(x, count, mean, m2, training=False)
    out0 = jax.block_until_ready(out0)
    assert np.allclose(np.asarray(out0), np.asarray(x)), "count<2 path mismatch"

    # --- 2) training pass: track() then normalize. ---
    out1, (count1, mean1, m21) = running_norm_forward(
        x, count, mean, m2, training=True)
    out1 = jax.block_until_ready(out1)
    ref1, (rc, rm, rm2) = _ref_forward(x, count, mean, m2, training=True)
    assert int(count1) == int(rc)
    assert np.allclose(np.asarray(mean1), np.asarray(rm), atol=1e-5)
    assert np.allclose(np.asarray(m21), np.asarray(rm2), atol=1e-4)
    assert np.allclose(np.asarray(out1), np.asarray(ref1), atol=1e-4)

    # --- 3) eval pass using the updated running statistics. ---
    out2, _ = running_norm_forward(x, count1, mean1, m21, training=False)
    out2 = jax.block_until_ready(out2)
    ref2, _ = _ref_forward(x, rc, rm, rm2, training=False)
    assert np.allclose(np.asarray(out2), np.asarray(ref2), atol=1e-4)

    # --- 4) multi-tile + partial-tile path (small explicit tile_rows). ---
    xb = jax.random.normal(k2, (3, 40, num_features), dtype=jnp.float32)
    out3, (count3, mean3, m23) = running_norm_forward(
        xb, count1, mean1, m21, training=True, tile_rows=8)
    out3 = jax.block_until_ready(out3)
    ref3, (rc3, rm3, rm23) = _ref_forward(xb, rc, rm, rm2, training=True)
    assert int(count3) == int(rc3)
    assert np.allclose(np.asarray(mean3), np.asarray(rm3), rtol=1e-5, atol=1e-4)
    assert np.allclose(np.asarray(m23), np.asarray(rm23), rtol=1e-4, atol=1e-3)
    assert np.allclose(np.asarray(out3), np.asarray(ref3), rtol=1e-4, atol=1e-3)

    # --- 5) native-dtype (bf16) eval path: no wrapper-side f32 upcast. ---
    xh = jax.random.normal(k3, (2, 8, num_features), dtype=jnp.bfloat16)
    out4, _ = running_norm_forward(xh, count3, mean3, m23, training=False)
    out4 = jax.block_until_ready(out4)
    assert out4.dtype == jnp.bfloat16
    ref4, _ = _ref_forward(xh, rc3, rm3, rm23, training=False)
    assert np.allclose(np.asarray(out4, dtype=np.float32),
                       np.asarray(ref4, dtype=np.float32), atol=5e-2)

    print("KERNEL_OK")
</pallas_src>

<mosaic_0001>
module attributes {stable_mosaic.version = 11 : i64} {
  func.func @kernel(%arg0: i32, %arg1: memref<1xi32, #tpu.memory_space<smem>>, %arg2: memref<4x128xf32, #tpu.memory_space<vmem>>, %arg3: memref<1x128xf32, #tpu.memory_space<vmem>>, %arg4: memref<1x128xf32, #tpu.memory_space<vmem>>, %arg5: memref<4x128xf32, #tpu.memory_space<vmem>>) attributes {dimension_semantics = [#tpu.dimension_semantics<parallel>], iteration_bounds = array<i64: 1>, scalar_prefetch = 1 : i64, scratch_operands = 0 : i64, tpu.core_type = #tpu.core_type<tc>, window_params = [{transform_indices = @transform_0, window_bounds = array<i64: 4, 128>}, {pipeline_mode = #tpu.pipeline_mode<synchronous>, transform_indices = @transform_1, window_bounds = array<i64: 1, 128>}, {pipeline_mode = #tpu.pipeline_mode<synchronous>, transform_indices = @transform_2, window_bounds = array<i64: 1, 128>}, {transform_indices = @transform_3, window_bounds = array<i64: 4, 128>}]} {
    %c0 = arith.constant 0 : index
    %0 = memref.load %arg1[%c0] : memref<1xi32, #tpu.memory_space<smem>>
    %c2_i32 = arith.constant 2 : i32
    %1 = arith.cmpi slt, %0, %c2_i32 : i32
    %2 = arith.extui %1 : i1 to i32
    %c0_i32 = arith.constant 0 : i32
    %3 = arith.cmpi ne, %2, %c0_i32 : i32
    scf.if %3 {
      %c0_2 = arith.constant 0 : index
      %c0_3 = arith.constant 0 : index
      %7 = vector.load %arg2[%c0_2, %c0_3] : memref<4x128xf32, #tpu.memory_space<vmem>>, vector<4x128xf32>
      %c0_4 = arith.constant 0 : index
      %c0_5 = arith.constant 0 : index
      %8 = vector.load %arg5[%c0_4, %c0_5] : memref<4x128xf32, #tpu.memory_space<vmem>>, vector<4x128xf32>
      tpu.vector_store %arg5[%c0_4, %c0_5], %7 {strides = array<i32>} : memref<4x128xf32, #tpu.memory_space<vmem>>, vector<4x128xf32>,
    } else {
    }
    %c2_i32_0 = arith.constant 2 : i32
    %4 = arith.cmpi sge, %0, %c2_i32_0 : i32
    %5 = arith.extui %4 : i1 to i32
    %c0_i32_1 = arith.constant 0 : i32
    %6 = arith.cmpi ne, %5, %c0_i32_1 : i32
    scf.if %6 {
      %c0_2 = arith.constant 0 : index
      %c0_3 = arith.constant 0 : index
      %7 = vector.load %arg2[%c0_2, %c0_3] : memref<4x128xf32, #tpu.memory_space<vmem>>, vector<4x128xf32>
      %8 = arith.sitofp %0 : i32 to f32
      %c0_4 = arith.constant 0 : index
      %c0_5 = arith.constant 0 : index
      %9 = vector.load %arg4[%c0_4, %c0_5] : memref<1x128xf32, #tpu.memory_space<vmem>>, vector<1x128xf32>
      %10 = vector.broadcast %8 : f32 to vector<1x128xf32>
      %11 = arith.divf %9, %10 : vector<1x128xf32>
      %cst = arith.constant 9.99999974E-6 : f32
      %12 = vector.broadcast %cst : f32 to vector<1x128xf32>
      %13 = arith.addf %11, %12 : vector<1x128xf32>
      %14 = math.rsqrt %13 : vector<1x128xf32>
      %c0_6 = arith.constant 0 : index
      %c0_7 = arith.constant 0 : index
      %15 = vector.load %arg3[%c0_6, %c0_7] : memref<1x128xf32, #tpu.memory_space<vmem>>, vector<1x128xf32>
      %16 = vector.broadcast %15 : vector<1x128xf32> to vector<4x128xf32>
      %17 = arith.subf %7, %16 : vector<4x128xf32>
      %18 = vector.broadcast %14 : vector<1x128xf32> to vector<4x128xf32>
      %19 = arith.mulf %17, %18 : vector<4x128xf32>
      %c0_8 = arith.constant 0 : index
      %c0_9 = arith.constant 0 : index
      %20 = vector.load %arg5[%c0_8, %c0_9] : memref<4x128xf32, #tpu.memory_space<vmem>>, vector<4x128xf32>
      tpu.vector_store %arg5[%c0_8, %c0_9], %19 {strides = array<i32>} : memref<4x128xf32, #tpu.memory_space<vmem>>, vector<4x128xf32>,
    } else {
    }
    return
  }
  func.func @transform_0(%arg0: i32, %arg1: memref<1xi32, #tpu.memory_space<smem>>) -> (i32, i32) {
    %c0_i32 = arith.constant 0 : i32
    %c0_i32_0 = arith.constant 0 : i32
    return %arg0, %c0_i32 : i32, i32
  }
  func.func @transform_1(%arg0: i32, %arg1: memref<1xi32, #tpu.memory_space<smem>>) -> (i32, i32) {
    %c0_i32 = arith.constant 0 : i32
    %c0_i32_0 = arith.constant 0 : i32
    %c0_i32_1 = arith.constant 0 : i32
    return %c0_i32, %c0_i32_0 : i32, i32
  }
  func.func @transform_2(%arg0: i32, %arg1: memref<1xi32, #tpu.memory_space<smem>>) -> (i32, i32) {
    %c0_i32 = arith.constant 0 : i32
    %c0_i32_0 = arith.constant 0 : i32
    %c0_i32_1 = arith.constant 0 : i32
    return %c0_i32, %c0_i32_0 : i32, i32
  }
  func.func @transform_3(%arg0: i32, %arg1: memref<1xi32, #tpu.memory_space<smem>>) -> (i32, i32) {
    %c0_i32 = arith.constant 0 : i32
    %c0_i32_0 = arith.constant 0 : i32
    return %arg0, %c0_i32 : i32, i32
  }
}

</mosaic_0001>

<llo_original>
// kernel: tpu_custom_call.1
$region0: #{tpu_custom_call.1}
  #allocation0 [shape = 'u32[]', space=smem, size = 0x4, offset = 0x4, fixed_abs, tag = 'smem constant byte address 0x4 - core index']
  #allocation1 [shape = 'u32[144,128]{1,0:T(1,128)}', space=vmem, size = 0x12000, scoped, tag = 'internal scratch']
  #allocation2 [shape = 's32[1]{0}', space=sflag, size = 0x4, scoped, tag = 'scoped memory for tpu_custom_call.1']
  #allocation3 [shape = 's32[1]{0:T(128)S(6)}', space=smem, size = 0x200, scoped, tag = 'prefetched SMEM operand 0']
  %s0 = inlined_call_operand.<no memory space> [shape: s32[1], index: 0, kind: input, shape index: {}]
  %s1 = inlined_call_operand.hbm [shape: f32[4,128], index: 1, kind: input, shape index: {}]
  %s2 = inlined_call_operand.vmem [shape: f32[1,128], index: 2, kind: input, shape index: {}]
  %s3 = inlined_call_operand.vmem [shape: f32[1,128], index: 3, kind: input, shape index: {}]
  %s4 = inlined_call_operand.hbm [shape: f32[4,128], index: 4, kind: output, shape index: {}]
  %s5 = sld [smem:[#allocation0]]
  $region34: #{tpu_custom_call.1} parent=0
    _
  %s7 = ssub.s32 1, %s5
  %s8 = scalar_select 0, %s7, %s5
  %9 = sst [smem:[#allocation3]] %s0
  $region1: #{tpu_custom_call.1} parent=0
    #allocation4 [shape = 'u8[2048]{0}', space=vmem, size = 0x800, scoped, tag = 'input window, operand 1, single buffered']
    #allocation5 [shape = 's32[1]{0}', space=sflag, size = 0x4, scoped, tag = 'scoped memory for tpu_custom_call.1']
    #allocation6 [shape = 's32[1]{0}', space=sflag, size = 0x4, scoped, tag = 'scoped memory for tpu_custom_call.1']
    #allocation7 [shape = 'u8[2048]{0}', space=vmem, size = 0x800, scoped, tag = 'output window, operand 0, single buffered']
    %10 = vsyncpa [#allocation5], 0
    %11 = vsyncpa [#allocation6], 0
    // Predicated region
    $region2: #{tpu_custom_call.1} parent=1 // pred_check
      _
    $region3: #{tpu_custom_call.1} parent=1 // pred_check_branch
      %13 = sbr.rel (0) target = $region5
    $region4: #{tpu_custom_call.1} parent=1 // pred_region
      %s15 = ssub.s32 64, 64
      %16 = vsyncadd [#allocation5], %s15
      %s18 = sshll.u32 [#allocation4], 4
      %s19 = int_to_ptr.vmem [resolvable:$true] %s18
      %21 = dma.hbm_to_vmem [thread:$0]  %s1, 64, %s19, [#allocation5]
    $region5: #{tpu_custom_call.1} parent=1 // pred_fallthru
      _
    // Predicated region
    $region6: #{tpu_custom_call.1} parent=1 // pred_check
      _
    $region7: #{tpu_custom_call.1} parent=1 // pred_check_branch
      %23 = sbr.rel (0) target = $region9
    $region8: #{tpu_custom_call.1} parent=1 // pred_region
      _
    $region9: #{tpu_custom_call.1} parent=1 // pred_fallthru
      _
    // Predicated region
    $region10: #{tpu_custom_call.1} parent=1 // pred_check
      _
    $region11: #{tpu_custom_call.1} parent=1 // pred_check_branch
      %25 = sbr.rel (0) target = $region13
    $region12: #{tpu_custom_call.1} parent=1 // pred_region
      _
    $region13: #{tpu_custom_call.1} parent=1 // pred_fallthru
      _
    // Predicated region
    $region14: #{tpu_custom_call.1} parent=1 // pred_check
      _
    $region15: #{tpu_custom_call.1} parent=1 // pred_check_branch
      %27 = sbr.rel (0) target = $region17
    $region16: #{tpu_custom_call.1} parent=1 // pred_region
      %28 = dma.done [#allocation5], 64
    $region17: #{tpu_custom_call.1} parent=1 // pred_fallthru
      _
    %s29 = sld [smem:[#allocation3]]
    %p30 = scmp.lt.s32.totalorder %s29, 2
    // Predicated region
    $region18: #{tpu_custom_call.1} parent=1 // pred_check
      %p31 = pneg %p30
    $region19: #{tpu_custom_call.1} parent=1 // pred_check_branch
      %33 = sbr.rel (%p31) target = $region21
    $region20: #{tpu_custom_call.1} parent=1 // pred_region
      %v34 = vld [vmem:[#allocation4] sm:$0xf]
      %35 = vst [vmem:[#allocation7] sm:$0xf] %v34
    $region21: #{tpu_custom_call.1} parent=1 // pred_fallthru
      _
    %p36 = scmp.ge.s32.totalorder %s29, 2
    // Predicated region
    $region22: #{tpu_custom_call.1} parent=1 // pred_check
      %p37 = pneg %p36
    $region23: #{tpu_custom_call.1} parent=1 // pred_check_branch
      %39 = sbr.rel (%p37) target = $region25
    $region24: #{tpu_custom_call.1} parent=1 // pred_region
      %v40 = vld [vmem:[#allocation4] sm:$0xf]
      %s41 = scvt.s32.f32 %s29
      %v42 = vld [vmem:[%s3] sm:$0x1]
      %v43 = vstv %s41
      %v44 = vrcp.pop %v43
      %v45 = vmul.f32 %v42, %v44
      %v46 = vadd.f32 %v45, 1e-05
      %v47 = vrsqrt.pop %v46
      %v48 = vld [vmem:[%s2] sm:$0x1]
      %v50 = vlaneseq
      %v51 = vshrl.u32 %v50, 7
      %v52 = vsub.s32 0, %v51
      %v53 = vrot.slane %v48, %v52
      %v55 = vsub.f32 %v40, %v53
      %v57 = vlaneseq
      %v58 = vshrl.u32 %v57, 7
      %v59 = vsub.s32 0, %v58
      %v60 = vrot.slane %v47, %v59
      %v62 = vmul.f32 %v55, %v60
      %63 = vst [vmem:[#allocation7] sm:$0xf] %v62
    $region25: #{tpu_custom_call.1} parent=1 // pred_fallthru
      _
    // Predicated region
    $region26: #{tpu_custom_call.1} parent=1 // pred_check
      _
    $region27: #{tpu_custom_call.1} parent=1 // pred_check_branch
      %65 = sbr.rel (0) target = $region29
    $region28: #{tpu_custom_call.1} parent=1 // pred_region
      %s67 = ssub.s32 64, 64
      %68 = vsyncadd [#allocation6], %s67
      %s70 = sshll.u32 [#allocation7], 4
      %s71 = int_to_ptr.vmem [resolvable:$true] %s70
      %73 = dma.vmem_to_hbm [thread:$0]  %s71, 64, %s4, [#allocation6]
    $region29: #{tpu_custom_call.1} parent=1 // pred_fallthru
      _
    // Predicated region
    $region30: #{tpu_custom_call.1} parent=1 // pred_check
      _
    $region31: #{tpu_custom_call.1} parent=1 // pred_check_branch
      %75 = sbr.rel (0) target = $region33
    $region32: #{tpu_custom_call.1} parent=1 // pred_region
      %76 = dma.done [#allocation6], 64
    $region33: #{tpu_custom_call.1} parent=1 // pred_fallthru
      _
    %77 = vsyncpa [#allocation5], 1
    %78 = vsyncpa [#allocation6], 1

</llo_original>
